<compile_context>
chip_gen: v5e
topology: v5e:2x2
jax: 0.10.0
libtpu: 0.0.40
codegen_flags: <defaults>
</compile_context>

<pallas_src>
import functools

import jax
import jax.numpy as jnp
from jax.experimental import pallas as pl
from jax.experimental.pallas import tpu as pltpu


def rnn_kernel(x_ref, wih_ref, whh_ref, b_ref, wfc_ref, bfc_ref, out_ref, *,
               seq_len):
    """One batch chunk.

    x_ref:  (T*Bc, I)  time-major flattened input for this chunk (rows
            t*Bc:(t+1)*Bc are timestep t).
    out_ref: (Bc, O)   y = h_T W_fc^T + b_fc with
             h_t = tanh(x_t W_ih^T + h_{t-1} W_hh^T + (b_ih + b_hh)).
    """
    bc, out_dim = out_ref.shape
    hidden = whh_ref.shape[0]

    # Hoisted input projection + fused biases: one batched MXU matmul covering
    # every timestep (no dependence on h -> off the serial chain).
    xw = (jnp.dot(x_ref[...], wih_ref[...], preferred_element_type=jnp.float32)
          + b_ref[...])                                        # (T*Bc, H)

    whh = whh_ref[...]                                         # (H, H)

    # Fully unrolled recurrence; h stays in vregs for the whole loop.
    # (T is small/static; for large T use a VMEM scratch for xw + fori_loop.)
    h = jnp.zeros((bc, hidden), dtype=jnp.float32)
    for t in range(seq_len):
        xw_t = xw[t * bc:(t + 1) * bc, :]                      # static, tile-aligned
        h = jnp.tanh(xw_t + jnp.dot(h, whh,
                                    preferred_element_type=jnp.float32))

    if out_dim == 1:
        # O == 1: VPU multiply + lane reduction instead of an (H, 1) MXU pass.
        y = jnp.sum(h * wfc_ref[...], axis=-1, keepdims=True) + bfc_ref[...]
    else:
        # General O: contraction over H against W_fc (O, H).
        y = (jax.lax.dot_general(h, wfc_ref[...], (((1,), (1,)), ((), ())),
                                 preferred_element_type=jnp.float32)
             + bfc_ref[...])
    out_ref[...] = y


def prepare_params(w_ih, w_hh, b_ih, b_hh, w_fc, b_fc):
    """One-time (model-load) weight prep: transposes, casts, fused bias."""
    H = w_ih.shape[0]
    O = w_fc.shape[0]
    return dict(
        wih_t=jnp.transpose(w_ih).astype(jnp.float32),          # (I, H)
        whh_t=jnp.transpose(w_hh).astype(jnp.float32),          # (H, H)
        b=(b_ih + b_hh).astype(jnp.float32).reshape(1, H),      # (1, H)
        wfc=w_fc.astype(jnp.float32),                           # (O, H)
        bfc=b_fc.astype(jnp.float32).reshape(1, O),             # (1, O)
    )


@jax.jit
def forward(params, x):
    """x: (B, T, I) batch-first, like PyTorch. Returns (B, O).

    The pad / time-major transpose / reshape of x are traced together with the
    pallas_call so XLA fuses them (no standalone tiny HBM round-trip ops).
    """
    B, T, I = x.shape
    H = params["whh_t"].shape[0]
    O = params["wfc"].shape[0]

    # Batch rows padded to a multiple of 8 (full sublanes); chunked so each
    # grid step's working set stays small on every TPU generation and the
    # "parallel" grid axis can be sharded across v7x's two TensorCores.
    B8 = ((B + 7) // 8) * 8
    chunk = min(B8, 256)                                  # multiple of 8
    B_pad = ((B8 + chunk - 1) // chunk) * chunk
    num_chunks = B_pad // chunk

    x_f = x.astype(jnp.float32)
    if B_pad != B:
        x_f = jnp.pad(x_f, ((0, B_pad - B), (0, 0), (0, 0)))
    # Per-chunk time-major layout: (num_chunks, T*chunk, I); within a chunk,
    # rows t*chunk:(t+1)*chunk are timestep t.
    x3d = (x_f.reshape(num_chunks, chunk, T, I)
           .transpose(0, 2, 1, 3)
           .reshape(num_chunks, T * chunk, I))

    out = pl.pallas_call(
        functools.partial(rnn_kernel, seq_len=T),
        out_shape=jax.ShapeDtypeStruct((B_pad, O), jnp.float32),
        grid=(num_chunks,),
        in_specs=[
            pl.BlockSpec((pl.Squeezed(), T * chunk, I), lambda c: (c, 0, 0)),
            pl.BlockSpec((I, H), lambda c: (0, 0)),
            pl.BlockSpec((H, H), lambda c: (0, 0)),
            pl.BlockSpec((1, H), lambda c: (0, 0)),
            pl.BlockSpec((O, H), lambda c: (0, 0)),
            pl.BlockSpec((1, O), lambda c: (0, 0)),
        ],
        out_specs=pl.BlockSpec((chunk, O), lambda c: (c, 0)),
        compiler_params=pltpu.CompilerParams(
            dimension_semantics=("parallel",)),
    )(x3d, params["wih_t"], params["whh_t"], params["b"],
      params["wfc"], params["bfc"])
    return out[:B]


def rnn_inflation_predictor(x, w_ih, w_hh, b_ih, b_hh, w_fc, b_fc):
    """Convenience wrapper (prep + forward). Prefer prepare_params() once +
    forward() per call in a serving loop."""
    return forward(prepare_params(w_ih, w_hh, b_ih, b_hh, w_fc, b_fc), x)


def reference_forward(x, w_ih, w_hh, b_ih, b_hh, w_fc, b_fc):
    """Pure-JAX reference matching torch.nn.RNN(batch_first=True) + Linear."""
    B, T, I = x.shape
    H = w_ih.shape[0]
    h = jnp.zeros((B, H), dtype=jnp.float32)

    def step(h, x_t):
        h_new = jnp.tanh(x_t @ w_ih.T + b_ih + h @ w_hh.T + b_hh)
        return h_new, None

    h_last, _ = jax.lax.scan(step, h, jnp.transpose(x, (1, 0, 2)))
    return h_last @ w_fc.T + b_fc


if __name__ == "__main__":
    # Shapes consistent with the module:
    #   input_size = 5 features (Lag_1, Lag_3, Lag_6, Rolling_Mean_3, Rolling_Std_3)
    #   hidden_size = 32 (HIDDEN_SIZE), output_size = 1 (OUTPUT_SIZE)
    B, T, I, H, O = 4, 8, 5, 32, 1

    key = jax.random.PRNGKey(0)
    kx, k1, k2, k3, k4, k5, k6 = jax.random.split(key, 7)

    # PyTorch-style uniform(-1/sqrt(H), 1/sqrt(H)) init.
    s = 1.0 / jnp.sqrt(jnp.float32(H))
    x = jax.random.normal(kx, (B, T, I), dtype=jnp.float32)
    w_ih = jax.random.uniform(k1, (H, I), jnp.float32, -s, s)
    w_hh = jax.random.uniform(k2, (H, H), jnp.float32, -s, s)
    b_ih = jax.random.uniform(k3, (H,), jnp.float32, -s, s)
    b_hh = jax.random.uniform(k4, (H,), jnp.float32, -s, s)
    w_fc = jax.random.uniform(k5, (O, H), jnp.float32, -s, s)
    b_fc = jax.random.uniform(k6, (O,), jnp.float32, -s, s)

    # Model-load-time weight prep, then the jit'd fused forward.
    params = prepare_params(w_ih, w_hh, b_ih, b_hh, w_fc, b_fc)
    out = forward(params, x)
    out = jax.block_until_ready(out)

    ref = reference_forward(x, w_ih, w_hh, b_ih, b_hh, w_fc, b_fc)
    assert out.shape == (B, O)
    assert jnp.allclose(out, ref, atol=1e-5, rtol=1e-5)

    print("KERNEL_OK")
</pallas_src>

<mosaic_0001>
module attributes {stable_mosaic.version = 11 : i64} {
  func.func @rnn_kernel(%arg0: i32, %arg1: memref<1x64x5xf32, #tpu.memory_space<vmem>>, %arg2: memref<5x32xf32, #tpu.memory_space<vmem>>, %arg3: memref<32x32xf32, #tpu.memory_space<vmem>>, %arg4: memref<1x32xf32, #tpu.memory_space<vmem>>, %arg5: memref<1x32xf32, #tpu.memory_space<vmem>>, %arg6: memref<1x1xf32, #tpu.memory_space<vmem>>, %arg7: memref<8x1xf32, #tpu.memory_space<vmem>>) attributes {dimension_semantics = [#tpu.dimension_semantics<parallel>], iteration_bounds = array<i64: 1>, scalar_prefetch = 0 : i64, scratch_operands = 0 : i64, tpu.core_type = #tpu.core_type<tc>, window_params = [{transform_indices = @transform_0, window_bounds = array<i64: 1, 64, 5>}, {pipeline_mode = #tpu.pipeline_mode<synchronous>, transform_indices = @transform_1, window_bounds = array<i64: 5, 32>}, {pipeline_mode = #tpu.pipeline_mode<synchronous>, transform_indices = @transform_2, window_bounds = array<i64: 32, 32>}, {pipeline_mode = #tpu.pipeline_mode<synchronous>, transform_indices = @transform_3, window_bounds = array<i64: 1, 32>}, {pipeline_mode = #tpu.pipeline_mode<synchronous>, transform_indices = @transform_4, window_bounds = array<i64: 1, 32>}, {pipeline_mode = #tpu.pipeline_mode<synchronous>, transform_indices = @transform_5, window_bounds = array<i64: 1, 1>}, {transform_indices = @transform_6, window_bounds = array<i64: 8, 1>}]} {
    %c0 = arith.constant 0 : index
    %c0_0 = arith.constant 0 : index
    %c0_1 = arith.constant 0 : index
    %0 = vector.load %arg1[%c0, %c0_0, %c0_1] : memref<1x64x5xf32, #tpu.memory_space<vmem>>, vector<1x64x5xf32>
    %1 = vector.shape_cast %0 : vector<1x64x5xf32> to vector<64x5xf32>
    %c0_2 = arith.constant 0 : index
    %c0_3 = arith.constant 0 : index
    %2 = vector.load %arg2[%c0_2, %c0_3] : memref<5x32xf32, #tpu.memory_space<vmem>>, vector<5x32xf32>
    %cst = arith.constant dense<0.000000e+00> : vector<64x32xf32>
    %3 = tpu.matmul %1, %2, %cst {dimension_numbers = #tpu.dot_dimension_numbers<[1], [0], [0], [1], [0, 0, 1, 1], [], []>} : vector<64x5xf32>, vector<5x32xf32>, vector<64x32xf32> -> vector<64x32xf32>
    %c0_4 = arith.constant 0 : index
    %c0_5 = arith.constant 0 : index
    %4 = vector.load %arg4[%c0_4, %c0_5] : memref<1x32xf32, #tpu.memory_space<vmem>>, vector<1x32xf32>
    %5 = vector.broadcast %4 : vector<1x32xf32> to vector<64x32xf32>
    %6 = arith.addf %3, %5 : vector<64x32xf32>
    %c0_6 = arith.constant 0 : index
    %c0_7 = arith.constant 0 : index
    %7 = vector.load %arg3[%c0_6, %c0_7] : memref<32x32xf32, #tpu.memory_space<vmem>>, vector<32x32xf32>
    %cst_8 = arith.constant 0.000000e+00 : f32
    %8 = vector.broadcast %cst_8 : f32 to vector<8x32xf32>
    %9 = vector.extract_strided_slice %6 {offsets = [0, 0], sizes = [8, 32], strides = [1, 1]} : vector<64x32xf32> to vector<8x32xf32>
    %cst_9 = arith.constant dense<0.000000e+00> : vector<8x32xf32>
    %10 = tpu.matmul %8, %7, %cst_9 {dimension_numbers = #tpu.dot_dimension_numbers<[1], [0], [0], [1], [0, 0, 1, 1], [], []>} : vector<8x32xf32>, vector<32x32xf32>, vector<8x32xf32> -> vector<8x32xf32>
    %11 = arith.addf %9, %10 : vector<8x32xf32>
    %12 = math.tanh %11 : vector<8x32xf32>
    %13 = vector.extract_strided_slice %6 {offsets = [8, 0], sizes = [8, 32], strides = [1, 1]} : vector<64x32xf32> to vector<8x32xf32>
    %cst_10 = arith.constant dense<0.000000e+00> : vector<8x32xf32>
    %14 = tpu.matmul %12, %7, %cst_10 {dimension_numbers = #tpu.dot_dimension_numbers<[1], [0], [0], [1], [0, 0, 1, 1], [], []>} : vector<8x32xf32>, vector<32x32xf32>, vector<8x32xf32> -> vector<8x32xf32>
    %15 = arith.addf %13, %14 : vector<8x32xf32>
    %16 = math.tanh %15 : vector<8x32xf32>
    %17 = vector.extract_strided_slice %6 {offsets = [16, 0], sizes = [8, 32], strides = [1, 1]} : vector<64x32xf32> to vector<8x32xf32>
    %cst_11 = arith.constant dense<0.000000e+00> : vector<8x32xf32>
    %18 = tpu.matmul %16, %7, %cst_11 {dimension_numbers = #tpu.dot_dimension_numbers<[1], [0], [0], [1], [0, 0, 1, 1], [], []>} : vector<8x32xf32>, vector<32x32xf32>, vector<8x32xf32> -> vector<8x32xf32>
    %19 = arith.addf %17, %18 : vector<8x32xf32>
    %20 = math.tanh %19 : vector<8x32xf32>
    %21 = vector.extract_strided_slice %6 {offsets = [24, 0], sizes = [8, 32], strides = [1, 1]} : vector<64x32xf32> to vector<8x32xf32>
    %cst_12 = arith.constant dense<0.000000e+00> : vector<8x32xf32>
    %22 = tpu.matmul %20, %7, %cst_12 {dimension_numbers = #tpu.dot_dimension_numbers<[1], [0], [0], [1], [0, 0, 1, 1], [], []>} : vector<8x32xf32>, vector<32x32xf32>, vector<8x32xf32> -> vector<8x32xf32>
    %23 = arith.addf %21, %22 : vector<8x32xf32>
    %24 = math.tanh %23 : vector<8x32xf32>
    %25 = vector.extract_strided_slice %6 {offsets = [32, 0], sizes = [8, 32], strides = [1, 1]} : vector<64x32xf32> to vector<8x32xf32>
    %cst_13 = arith.constant dense<0.000000e+00> : vector<8x32xf32>
    %26 = tpu.matmul %24, %7, %cst_13 {dimension_numbers = #tpu.dot_dimension_numbers<[1], [0], [0], [1], [0, 0, 1, 1], [], []>} : vector<8x32xf32>, vector<32x32xf32>, vector<8x32xf32> -> vector<8x32xf32>
    %27 = arith.addf %25, %26 : vector<8x32xf32>
    %28 = math.tanh %27 : vector<8x32xf32>
    %29 = vector.extract_strided_slice %6 {offsets = [40, 0], sizes = [8, 32], strides = [1, 1]} : vector<64x32xf32> to vector<8x32xf32>
    %cst_14 = arith.constant dense<0.000000e+00> : vector<8x32xf32>
    %30 = tpu.matmul %28, %7, %cst_14 {dimension_numbers = #tpu.dot_dimension_numbers<[1], [0], [0], [1], [0, 0, 1, 1], [], []>} : vector<8x32xf32>, vector<32x32xf32>, vector<8x32xf32> -> vector<8x32xf32>
    %31 = arith.addf %29, %30 : vector<8x32xf32>
    %32 = math.tanh %31 : vector<8x32xf32>
    %33 = vector.extract_strided_slice %6 {offsets = [48, 0], sizes = [8, 32], strides = [1, 1]} : vector<64x32xf32> to vector<8x32xf32>
    %cst_15 = arith.constant dense<0.000000e+00> : vector<8x32xf32>
    %34 = tpu.matmul %32, %7, %cst_15 {dimension_numbers = #tpu.dot_dimension_numbers<[1], [0], [0], [1], [0, 0, 1, 1], [], []>} : vector<8x32xf32>, vector<32x32xf32>, vector<8x32xf32> -> vector<8x32xf32>
    %35 = arith.addf %33, %34 : vector<8x32xf32>
    %36 = math.tanh %35 : vector<8x32xf32>
    %37 = vector.extract_strided_slice %6 {offsets = [56, 0], sizes = [8, 32], strides = [1, 1]} : vector<64x32xf32> to vector<8x32xf32>
    %cst_16 = arith.constant dense<0.000000e+00> : vector<8x32xf32>
    %38 = tpu.matmul %36, %7, %cst_16 {dimension_numbers = #tpu.dot_dimension_numbers<[1], [0], [0], [1], [0, 0, 1, 1], [], []>} : vector<8x32xf32>, vector<32x32xf32>, vector<8x32xf32> -> vector<8x32xf32>
    %39 = arith.addf %37, %38 : vector<8x32xf32>
    %40 = math.tanh %39 : vector<8x32xf32>
    %c0_17 = arith.constant 0 : index
    %c0_18 = arith.constant 0 : index
    %41 = vector.load %arg5[%c0_17, %c0_18] : memref<1x32xf32, #tpu.memory_space<vmem>>, vector<1x32xf32>
    %42 = vector.broadcast %41 : vector<1x32xf32> to vector<8x32xf32>
    %43 = arith.mulf %40, %42 : vector<8x32xf32>
    %cst_19 = arith.constant dense<0.000000e+00> : vector<8xf32>
    %44 = vector.multi_reduction <add>, %43, %cst_19 [1] : vector<8x32xf32> to vector<8xf32>
    %45 = vector.shape_cast %44 : vector<8xf32> to vector<8x1xf32>
    %c0_20 = arith.constant 0 : index
    %c0_21 = arith.constant 0 : index
    %46 = vector.load %arg6[%c0_20, %c0_21] : memref<1x1xf32, #tpu.memory_space<vmem>>, vector<1x1xf32>
    %47 = vector.broadcast %46 : vector<1x1xf32> to vector<8x1xf32>
    %48 = arith.addf %45, %47 : vector<8x1xf32>
    %c0_22 = arith.constant 0 : index
    %c0_23 = arith.constant 0 : index
    %49 = vector.load %arg7[%c0_22, %c0_23] : memref<8x1xf32, #tpu.memory_space<vmem>>, vector<8x1xf32>
    tpu.vector_store %arg7[%c0_22, %c0_23], %48 {strides = array<i32>} : memref<8x1xf32, #tpu.memory_space<vmem>>, vector<8x1xf32>,
    return
  }
  func.func @transform_0(%arg0: i32) -> (i32, i32, i32) {
    %c0_i32 = arith.constant 0 : i32
    %c0_i32_0 = arith.constant 0 : i32
    %c0_i32_1 = arith.constant 0 : i32
    return %arg0, %c0_i32, %c0_i32_0 : i32, i32, i32
  }
  func.func @transform_1(%arg0: i32) -> (i32, i32) {
    %c0_i32 = arith.constant 0 : i32
    %c0_i32_0 = arith.constant 0 : i32
    %c0_i32_1 = arith.constant 0 : i32
    return %c0_i32, %c0_i32_0 : i32, i32
  }
  func.func @transform_2(%arg0: i32) -> (i32, i32) {
    %c0_i32 = arith.constant 0 : i32
    %c0_i32_0 = arith.constant 0 : i32
    %c0_i32_1 = arith.constant 0 : i32
    return %c0_i32, %c0_i32_0 : i32, i32
  }
  func.func @transform_3(%arg0: i32) -> (i32, i32) {
    %c0_i32 = arith.constant 0 : i32
    %c0_i32_0 = arith.constant 0 : i32
    %c0_i32_1 = arith.constant 0 : i32
    return %c0_i32, %c0_i32_0 : i32, i32
  }
  func.func @transform_4(%arg0: i32) -> (i32, i32) {
    %c0_i32 = arith.constant 0 : i32
    %c0_i32_0 = arith.constant 0 : i32
    %c0_i32_1 = arith.constant 0 : i32
    return %c0_i32, %c0_i32_0 : i32, i32
  }
  func.func @transform_5(%arg0: i32) -> (i32, i32) {
    %c0_i32 = arith.constant 0 : i32
    %c0_i32_0 = arith.constant 0 : i32
    %c0_i32_1 = arith.constant 0 : i32
    return %c0_i32, %c0_i32_0 : i32, i32
  }
  func.func @transform_6(%arg0: i32) -> (i32, i32) {
    %c0_i32 = arith.constant 0 : i32
    %c0_i32_0 = arith.constant 0 : i32
    return %arg0, %c0_i32 : i32, i32
  }
}

</mosaic_0001>

<llo_original>
// kernel: forward.1
$region0: #{forward.1}
  #allocation0 [shape = 'u32[]', space=smem, size = 0x4, offset = 0x4, fixed_abs, tag = 'smem constant byte address 0x4 - core index']
  #allocation1 [shape = 'u32[72,128]{1,0:T(1,128)}', space=vmem, size = 0x9000, scoped, tag = 'internal scratch']
  #allocation2 [shape = 'f32[1,1]{1,0:T(1,128)S(1)}', space=vmem, size = 0x200, scoped, tag = 'scoped memory for forward.1']
  %s0 = inlined_call_operand.vmem [shape: f32[1,64,5], index: 0, kind: input, shape index: {}]
  %s1 = inlined_call_operand.vmem [shape: f32[5,32], index: 1, kind: input, shape index: {}]
  %s2 = inlined_call_operand.vmem [shape: f32[32,32], index: 2, kind: input, shape index: {}]
  %s3 = inlined_call_operand.vmem [shape: f32[1,32], index: 3, kind: input, shape index: {}]
  %s4 = inlined_call_operand.vmem [shape: f32[1,32], index: 4, kind: input, shape index: {}]
  %s5 = inlined_call_operand.<no memory space> [shape: f32[1,1], index: 5, kind: input, shape index: {}]
  %s6 = inlined_call_operand.vmem [shape: f32[8,1], index: 6, kind: output, shape index: {}]
  %s7 = sld [smem:[#allocation0]]
  $region34: #{forward.1} parent=0
    _
  %s9 = ssub.s32 1, %s7
  %s10 = scalar_select 0, %s9, %s7
  %v11 = vstv %s5
  %12 = vst [vmem:[#allocation2] sm:$0x1] %v11
  // Predicated region
  $region2: #{forward.1} parent=0 // pred_check
    _
  $region3: #{forward.1} parent=0 // pred_check_branch
    %14 = sbr.rel (0) target = $region5
  $region4: #{forward.1} parent=0 // pred_region
    _
  $region5: #{forward.1} parent=0 // pred_fallthru
    _
  // Predicated region
  $region6: #{forward.1} parent=0 // pred_check
    _
  $region7: #{forward.1} parent=0 // pred_check_branch
    %16 = sbr.rel (0) target = $region9
  $region8: #{forward.1} parent=0 // pred_region
    _
  $region9: #{forward.1} parent=0 // pred_fallthru
    _
  // Predicated region
  $region10: #{forward.1} parent=0 // pred_check
    _
  $region11: #{forward.1} parent=0 // pred_check_branch
    %18 = sbr.rel (0) target = $region13
  $region12: #{forward.1} parent=0 // pred_region
    _
  $region13: #{forward.1} parent=0 // pred_fallthru
    _
  // Predicated region
  $region14: #{forward.1} parent=0 // pred_check
    _
  $region15: #{forward.1} parent=0 // pred_check_branch
    %20 = sbr.rel (0) target = $region17
  $region16: #{forward.1} parent=0 // pred_region
    _
  $region17: #{forward.1} parent=0 // pred_fallthru
    _
  // Predicated region
  $region18: #{forward.1} parent=0 // pred_check
    _
  $region19: #{forward.1} parent=0 // pred_check_branch
    %22 = sbr.rel (0) target = $region21
  $region20: #{forward.1} parent=0 // pred_region
    _
  $region21: #{forward.1} parent=0 // pred_fallthru
    _
  // Predicated region
  $region22: #{forward.1} parent=0 // pred_check
    _
  $region23: #{forward.1} parent=0 // pred_check_branch
    %24 = sbr.rel (0) target = $region25
  $region24: #{forward.1} parent=0 // pred_region
    _
  $region25: #{forward.1} parent=0 // pred_fallthru
    _
  %v25 = vld [vmem:[%s0] sm:$0xff]
  %v26 = vld [vmem:[%s0 + $0x8] sm:$0xff]
  %v27 = vld [vmem:[%s0 + $0x10] sm:$0xff]
  %v28 = vld [vmem:[%s0 + $0x18] sm:$0xff]
  %v29 = vld [vmem:[%s0 + $0x20] sm:$0xff]
  %v30 = vld [vmem:[%s0 + $0x28] sm:$0xff]
  %v31 = vld [vmem:[%s0 + $0x30] sm:$0xff]
  %v32 = vld [vmem:[%s0 + $0x38] sm:$0xff]
  %v33 = vld [vmem:[%s1] sm:$0x1f]
  %v34 = vld [vmem:[%s3] sm:$0x1]
  %v36 = vperm.slane %v34, 0
  %vm38 = vcmask 39936
  %v40 = vsel %vm38, %v25, 0
  %v43 = vsel %vm38, %v26, 0
  %v46 = vsel %vm38, %v27, 0
  %v49 = vsel %vm38, %v28, 0
  %v52 = vsel %vm38, %v29, 0
  %v55 = vsel %vm38, %v30, 0
  %v58 = vsel %vm38, %v31, 0
  %v61 = vsel %vm38, %v32, 0
  %vm63 = vcmask 1044480
  %v65 = vsel %vm63, %v33, 0
  %67 = vmatpush.msra.mxu0 0.0
  %68 = vmatpush.msra.mxu0 0.0
  %69 = vmatpush.msra.mxu0 0.0
  %70 = vmatpush.msra.mxu0 0.0
  %71 = vmatpush.msra.mxu0 0.0
  %72 = vmatpush.msra.mxu0 0.0
  %73 = vmatpush.msra.mxu0 0.0
  %74 = vmatpush.msra.mxu0 0.0
  %75 = vmatpush.msra.mxu0 0.0
  %76 = vmatpush.msra.mxu0 0.0
  %77 = vmatpush.msra.mxu0 0.0
  %78 = vmatpush.msra.mxu0 0.0
  %79 = vmatpush.msra.mxu0 0.0
  %80 = vmatpush.msra.mxu0 0.0
  %81 = vmatpush.msra.mxu0 0.0
  %82 = vmatpush.msra.mxu0 %v65
  %83 = vmatmul.f32.gmra.mxu0 %v40
  %v84 = vpop.f32.mrf.mxu0
  %v85 = vadd.f32 %v36, %v84
  %86 = vmatmul.f32.gmra.mxu0 %v43
  %v87 = vpop.f32.mrf.mxu0
  %v88 = vadd.f32 %v36, %v87
  %89 = vmatmul.f32.gmra.mxu0 %v46
  %v90 = vpop.f32.mrf.mxu0
  %v91 = vadd.f32 %v36, %v90
  %92 = vmatmul.f32.gmra.mxu0 %v49
  %v93 = vpop.f32.mrf.mxu0
  %v94 = vadd.f32 %v36, %v93
  %95 = vmatmul.f32.gmra.mxu0 %v52
  %v96 = vpop.f32.mrf.mxu0
  %v97 = vadd.f32 %v36, %v96
  %98 = vmatmul.f32.gmra.mxu0 %v55
  %v99 = vpop.f32.mrf.mxu0
  %v100 = vadd.f32 %v36, %v99
  %101 = vmatmul.f32.gmra.mxu0 %v58
  %v102 = vpop.f32.mrf.mxu0
  %v103 = vadd.f32 %v36, %v102
  %104 = vmatmul.f32.gmra.mxu0 %v61
  %v105 = vpop.f32.mrf.mxu0
  %v106 = vadd.f32 %v36, %v105
  %107 = vdwg.mxu0
  %v108 = vld [vmem:[%s2] sm:$0xff]
  %v109 = vld [vmem:[%s2 + $0x8] sm:$0xff]
  %v110 = vld [vmem:[%s2 + $0x10] sm:$0xff]
  %v111 = vld [vmem:[%s2 + $0x18] sm:$0xff]
  %vm112 = vcmask 261120
  %v114 = vsel %vm112, 0.0, 0
  %116 = vmatpush.msra.mxu0 0.0
  %117 = vmatpush.msra.mxu0 0.0
  %118 = vmatpush.msra.mxu0 0.0
  %119 = vmatpush.msra.mxu0 0.0
  %120 = vmatpush.msra.mxu0 0.0
  %121 = vmatpush.msra.mxu0 0.0
  %122 = vmatpush.msra.mxu0 0.0
  %123 = vmatpush.msra.mxu0 0.0
  %124 = vmatpush.msra.mxu0 0.0
  %125 = vmatpush.msra.mxu0 0.0
  %126 = vmatpush.msra.mxu0 0.0
  %127 = vmatpush.msra.mxu0 0.0
  %128 = vmatpush.msra.mxu0 %v111
  %129 = vmatpush.msra.mxu0 %v110
  %130 = vmatpush.msra.mxu0 %v109
  %131 = vmatpush.msra.mxu0 %v108
  %132 = vmatmul.f32.gmra.mxu0 %v114
  %v133 = vpop.f32.mrf.mxu0
  %v134 = vadd.f32 0.0, %v133
  %135 = vdwg.mxu0
  %v136 = vadd.f32 %v85, %v134
  %v137 = vtanh.pop %v136
  %v139 = vsel %vm112, %v137, 0
  %141 = vmatpush.msra.mxu0 0.0
  %142 = vmatpush.msra.mxu0 0.0
  %143 = vmatpush.msra.mxu0 0.0
  %144 = vmatpush.msra.mxu0 0.0
  %145 = vmatpush.msra.mxu0 0.0
  %146 = vmatpush.msra.mxu0 0.0
  %147 = vmatpush.msra.mxu0 0.0
  %148 = vmatpush.msra.mxu0 0.0
  %149 = vmatpush.msra.mxu0 0.0
  %150 = vmatpush.msra.mxu0 0.0
  %151 = vmatpush.msra.mxu0 0.0
  %152 = vmatpush.msra.mxu0 0.0
  %153 = vmatpush.msra.mxu0 %v111
  %154 = vmatpush.msra.mxu0 %v110
  %155 = vmatpush.msra.mxu0 %v109
  %156 = vmatpush.msra.mxu0 %v108
  %157 = vmatmul.f32.gmra.mxu0 %v139
  %v158 = vpop.f32.mrf.mxu0
  %v159 = vadd.f32 0.0, %v158
  %160 = vdwg.mxu0
  %v161 = vadd.f32 %v88, %v159
  %v162 = vtanh.pop %v161
  %v164 = vsel %vm112, %v162, 0
  %166 = vmatpush.msra.mxu0 0.0
  %167 = vmatpush.msra.mxu0 0.0
  %168 = vmatpush.msra.mxu0 0.0
  %169 = vmatpush.msra.mxu0 0.0
  %170 = vmatpush.msra.mxu0 0.0
  %171 = vmatpush.msra.mxu0 0.0
  %172 = vmatpush.msra.mxu0 0.0
  %173 = vmatpush.msra.mxu0 0.0
  %174 = vmatpush.msra.mxu0 0.0
  %175 = vmatpush.msra.mxu0 0.0
  %176 = vmatpush.msra.mxu0 0.0
  %177 = vmatpush.msra.mxu0 0.0
  %178 = vmatpush.msra.mxu0 %v111
  %179 = vmatpush.msra.mxu0 %v110
  %180 = vmatpush.msra.mxu0 %v109
  %181 = vmatpush.msra.mxu0 %v108
  %182 = vmatmul.f32.gmra.mxu0 %v164
  %v183 = vpop.f32.mrf.mxu0
  %v184 = vadd.f32 0.0, %v183
  %185 = vdwg.mxu0
  %v186 = vadd.f32 %v91, %v184
  %v187 = vtanh.pop %v186
  %v189 = vsel %vm112, %v187, 0
  %191 = vmatpush.msra.mxu0 0.0
  %192 = vmatpush.msra.mxu0 0.0
  %193 = vmatpush.msra.mxu0 0.0
  %194 = vmatpush.msra.mxu0 0.0
  %195 = vmatpush.msra.mxu0 0.0
  %196 = vmatpush.msra.mxu0 0.0
  %197 = vmatpush.msra.mxu0 0.0
  %198 = vmatpush.msra.mxu0 0.0
  %199 = vmatpush.msra.mxu0 0.0
  %200 = vmatpush.msra.mxu0 0.0
  %201 = vmatpush.msra.mxu0 0.0
  %202 = vmatpush.msra.mxu0 0.0
  %203 = vmatpush.msra.mxu0 %v111
  %204 = vmatpush.msra.mxu0 %v110
  %205 = vmatpush.msra.mxu0 %v109
  %206 = vmatpush.msra.mxu0 %v108
  %207 = vmatmul.f32.gmra.mxu0 %v189
  %v208 = vpop.f32.mrf.mxu0
  %v209 = vadd.f32 0.0, %v208
  %210 = vdwg.mxu0
  %v211 = vadd.f32 %v94, %v209
  %v212 = vtanh.pop %v211
  %v214 = vsel %vm112, %v212, 0
  %216 = vmatpush.msra.mxu0 0.0
  %217 = vmatpush.msra.mxu0 0.0
  %218 = vmatpush.msra.mxu0 0.0
  %219 = vmatpush.msra.mxu0 0.0
  %220 = vmatpush.msra.mxu0 0.0
  %221 = vmatpush.msra.mxu0 0.0
  %222 = vmatpush.msra.mxu0 0.0
  %223 = vmatpush.msra.mxu0 0.0
  %224 = vmatpush.msra.mxu0 0.0
  %225 = vmatpush.msra.mxu0 0.0
  %226 = vmatpush.msra.mxu0 0.0
  %227 = vmatpush.msra.mxu0 0.0
  %228 = vmatpush.msra.mxu0 %v111
  %229 = vmatpush.msra.mxu0 %v110
  %230 = vmatpush.msra.mxu0 %v109
  %231 = vmatpush.msra.mxu0 %v108
  %232 = vmatmul.f32.gmra.mxu0 %v214
  %v233 = vpop.f32.mrf.mxu0
  %v234 = vadd.f32 0.0, %v233
  %235 = vdwg.mxu0
  %v236 = vadd.f32 %v97, %v234
  %v237 = vtanh.pop %v236
  %v239 = vsel %vm112, %v237, 0
  %241 = vmatpush.msra.mxu0 0.0
  %242 = vmatpush.msra.mxu0 0.0
  %243 = vmatpush.msra.mxu0 0.0
  %244 = vmatpush.msra.mxu0 0.0
  %245 = vmatpush.msra.mxu0 0.0
  %246 = vmatpush.msra.mxu0 0.0
  %247 = vmatpush.msra.mxu0 0.0
  %248 = vmatpush.msra.mxu0 0.0
  %249 = vmatpush.msra.mxu0 0.0
  %250 = vmatpush.msra.mxu0 0.0
  %251 = vmatpush.msra.mxu0 0.0
  %252 = vmatpush.msra.mxu0 0.0
  %253 = vmatpush.msra.mxu0 %v111
  %254 = vmatpush.msra.mxu0 %v110
  %255 = vmatpush.msra.mxu0 %v109
  %256 = vmatpush.msra.mxu0 %v108
  %257 = vmatmul.f32.gmra.mxu0 %v239
  %v258 = vpop.f32.mrf.mxu0
  %v259 = vadd.f32 0.0, %v258
  %260 = vdwg.mxu0
  %v261 = vadd.f32 %v100, %v259
  %v262 = vtanh.pop %v261
  %v264 = vsel %vm112, %v262, 0
  %266 = vmatpush.msra.mxu0 0.0
  %267 = vmatpush.msra.mxu0 0.0
  %268 = vmatpush.msra.mxu0 0.0
  %269 = vmatpush.msra.mxu0 0.0
  %270 = vmatpush.msra.mxu0 0.0
  %271 = vmatpush.msra.mxu0 0.0
  %272 = vmatpush.msra.mxu0 0.0
  %273 = vmatpush.msra.mxu0 0.0
  %274 = vmatpush.msra.mxu0 0.0
  %275 = vmatpush.msra.mxu0 0.0
  %276 = vmatpush.msra.mxu0 0.0
  %277 = vmatpush.msra.mxu0 0.0
  %278 = vmatpush.msra.mxu0 %v111
  %279 = vmatpush.msra.mxu0 %v110
  %280 = vmatpush.msra.mxu0 %v109
  %281 = vmatpush.msra.mxu0 %v108
  %282 = vmatmul.f32.gmra.mxu0 %v264
  %v283 = vpop.f32.mrf.mxu0
  %v284 = vadd.f32 0.0, %v283
  %285 = vdwg.mxu0
  %v286 = vadd.f32 %v103, %v284
  %v287 = vtanh.pop %v286
  %v289 = vsel %vm112, %v287, 0
  %291 = vmatpush.msra.mxu0 0.0
  %292 = vmatpush.msra.mxu0 0.0
  %293 = vmatpush.msra.mxu0 0.0
  %294 = vmatpush.msra.mxu0 0.0
  %295 = vmatpush.msra.mxu0 0.0
  %296 = vmatpush.msra.mxu0 0.0
  %297 = vmatpush.msra.mxu0 0.0
  %298 = vmatpush.msra.mxu0 0.0
  %299 = vmatpush.msra.mxu0 0.0
  %300 = vmatpush.msra.mxu0 0.0
  %301 = vmatpush.msra.mxu0 0.0
  %302 = vmatpush.msra.mxu0 0.0
  %303 = vmatpush.msra.mxu0 %v111
  %304 = vmatpush.msra.mxu0 %v110
  %305 = vmatpush.msra.mxu0 %v109
  %306 = vmatpush.msra.mxu0 %v108
  %307 = vmatmul.f32.gmra.mxu0 %v289
  %v308 = vpop.f32.mrf.mxu0
  %v309 = vadd.f32 0.0, %v308
  %310 = vdwg.mxu0
  %v311 = vadd.f32 %v106, %v309
  %v312 = vtanh.pop %v311
  %v313 = vld [vmem:[%s4] sm:$0x1]
  %v315 = vperm.slane %v313, 0
  %v317 = vmul.f32 %v312, %v315
  %v318 = vsel %vm112, %v317, 0.0
  %319 = vadd.xlane.f32.xlu0 %v318
  %v320 = vpop.xlane.xlu0 %319
  %v321 = vld [vmem:[#allocation2] sm:$0x1]
  %v323 = vperm.slane %v321, 0
  %v325 = vadd.f32 %v320, %v323
  %vm326 = vcmask 7168
  %327 = vst.msk [vmem:[%s6] sm:$0xff] %vm326, %v325
  // Predicated region
  $region26: #{forward.1} parent=0 // pred_check
    _
  $region27: #{forward.1} parent=0 // pred_check_branch
    %329 = sbr.rel (0) target = $region29
  $region28: #{forward.1} parent=0 // pred_region
    _
  $region29: #{forward.1} parent=0 // pred_fallthru
    _
  // Predicated region
  $region30: #{forward.1} parent=0 // pred_check
    _
  $region31: #{forward.1} parent=0 // pred_check_branch
    %331 = sbr.rel (0) target = $region33
  $region32: #{forward.1} parent=0 // pred_region
    _
  $region33: #{forward.1} parent=0 // pred_fallthru
    _

</llo_original>
